<compile_context>
chip_gen: v6e
topology: v6e:2x2x1
jax: 0.10.0
libtpu: 0.0.40
codegen_flags: <defaults>
</compile_context>

<pallas_src>
import functools

import jax
import jax.numpy as jnp
from jax.experimental import pallas as pl
from jax.experimental.pallas import tpu as pltpu


def _round_up(n, m):
    return ((n + m - 1) // m) * m


def _spread_kernel(x_ref, e_ref, bias_ref, weight_ref, o_ref, *,
                   min_bias, max_bias, normalize_bias):
    # x_ref:      (TB, C)    batch-row tile of the input
    # e_ref:      (C, H*C)   constant 0/1 selection matrix (replicates x over H)
    # bias_ref:   (1, H*C)   raw bias parameter, flattened (resident block)
    # weight_ref: (1, H*C)   raw weight parameter, flattened (resident block)
    # o_ref:      (TB, H*C)  lane-dense output tile
    b = bias_ref[...]
    if normalize_bias:
        b = jnp.clip(b, min_bias, max_bias)
    w = jnp.maximum(weight_ref[...], 0.0)
    # Broadcast x over the hidden axis: (TB, C) @ (C, H*C) -> (TB, H*C) with
    # x_b[r, h*C + c] == x[r, c].  Exact (single nonzero term per column),
    # runs on the otherwise-idle MXU.
    x_b = jnp.dot(x_ref[...], e_ref[...], preferred_element_type=jnp.float32)
    o_ref[...] = (x_b + b) * w


def criterion_layer_spread_forward(x, bias, weight, *, input_range=(0.0, 1.0),
                                   normalize_bias=False, block_rows=None):
    """x: (B, C) or (B, 1, C); bias, weight: (H, C).  Returns (B, H, C) f32."""
    H, C = bias.shape
    x2d = jnp.asarray(x, jnp.float32).reshape(-1, C)
    B = x2d.shape[0]
    HC = H * C

    # Mirrors the PyTorch __init__: input_range is negated before min/max.
    neg_range = (-float(input_range[0]), -float(input_range[1]))
    max_bias = max(neg_range)
    min_bias = min(neg_range)

    bias2d = jnp.asarray(bias, jnp.float32).reshape(1, HC)
    weight2d = jnp.asarray(weight, jnp.float32).reshape(1, HC)
    # Selection matrix: E[c, h*C + c'] = 1 iff c == c'  (built once, tiny).
    e_mat = jnp.tile(jnp.eye(C, dtype=jnp.float32), (1, H))

    # Row tiling: pick the biggest sublane-aligned tile whose double-buffered
    # x/out footprint (+ resident E/bias/weight + slack) stays under ~24 MiB.
    resident_bytes = 4 * (C * HC + 2 * HC)
    if block_rows is None:
        budget = 24 * 1024 * 1024 - resident_bytes
        rows = budget // (2 * 4 * (C + HC))          # 2 buffers of (x + out)
        block_rows = int(max(8, min(2048, rows)))
    block_rows = max(8, (int(block_rows) // 8) * 8)
    tb = min(block_rows, _round_up(B, 8))
    b_pad = _round_up(B, tb)
    if b_pad != B:
        x2d = jnp.pad(x2d, ((0, b_pad - B), (0, 0)))

    tile_bytes = 4 * tb * (C + HC)
    vmem_limit = int(min(32 * 1024 * 1024,
                         2 * tile_bytes + 2 * resident_bytes + (4 << 20)))

    kernel = functools.partial(_spread_kernel,
                               min_bias=min_bias, max_bias=max_bias,
                               normalize_bias=bool(normalize_bias))

    out2d = pl.pallas_call(
        kernel,
        out_shape=jax.ShapeDtypeStruct((b_pad, HC), jnp.float32),
        grid=(b_pad // tb,),
        in_specs=[
            pl.BlockSpec((tb, C), lambda i: (i, 0)),     # x rows (tiled)
            pl.BlockSpec((C, HC), lambda i: (0, 0)),     # E (resident)
            pl.BlockSpec((1, HC), lambda i: (0, 0)),     # bias (resident)
            pl.BlockSpec((1, HC), lambda i: (0, 0)),     # weight (resident)
        ],
        out_specs=pl.BlockSpec((tb, HC), lambda i: (i, 0)),
        compiler_params=pltpu.CompilerParams(
            dimension_semantics=("parallel",),
            vmem_limit_bytes=vmem_limit),
    )(x2d, e_mat, bias2d, weight2d)

    return out2d[:B].reshape(B, H, C)


if __name__ == "__main__":
    key = jax.random.PRNGKey(0)
    k_x, k_w, k_b = jax.random.split(key, 3)

    B, H, C = 60, 8, 16          # batch, hidden_nr, criteria_nr  (H*C = 128 lanes)
    input_range = (0.0, 1.0)
    neg_range = (-input_range[0], -input_range[1])
    max_bias = max(neg_range)
    min_bias = min(neg_range)

    # x in input_range, broadcastable over hidden_nr (as the PyTorch forward implies).
    x = jax.random.uniform(k_x, (B, 1, C), dtype=jnp.float32)
    # weight ~ U(1, 10) as in reset_parameters(); bias drawn a bit outside
    # [min_bias, max_bias] so the normalize_bias clamp path is actually exercised.
    weight = jax.random.uniform(k_w, (H, C), minval=1.0, maxval=10.0,
                                dtype=jnp.float32)
    bias = jax.random.uniform(k_b, (H, C), minval=min_bias - 0.5,
                              maxval=max_bias + 0.5, dtype=jnp.float32)

    for normalize_bias in (False, True):
        out = criterion_layer_spread_forward(
            x, bias, weight, input_range=input_range,
            normalize_bias=normalize_bias, block_rows=16)   # grid of 4 row tiles
        out = jax.block_until_ready(out)

        # Pure-JAX reference.
        b_eff = jnp.clip(bias, min_bias, max_bias) if normalize_bias else bias
        w_eff = jnp.maximum(weight, 0.0)
        ref = (x.reshape(B, 1, C) + b_eff[None, :, :]) * w_eff[None, :, :]

        assert out.shape == (B, H, C)
        assert jnp.allclose(out, ref, atol=1e-5, rtol=1e-5), normalize_bias

    # Also exercise the auto-sized (large) row tile path once.
    out_auto = jax.block_until_ready(criterion_layer_spread_forward(
        x, bias, weight, input_range=input_range, normalize_bias=True))
    ref_auto = (x.reshape(B, 1, C) + jnp.clip(bias, min_bias, max_bias)[None]) \
        * jnp.maximum(weight, 0.0)[None]
    assert jnp.allclose(out_auto, ref_auto, atol=1e-5, rtol=1e-5)

    print("KERNEL_OK")
</pallas_src>

<mosaic_0001>
module attributes {stable_mosaic.version = 11 : i64} {
  func.func @_spread_kernel(%arg0: i32, %arg1: memref<16x16xf32, #tpu.memory_space<vmem>>, %arg2: memref<16x128xf32, #tpu.memory_space<vmem>>, %arg3: memref<1x128xf32, #tpu.memory_space<vmem>>, %arg4: memref<1x128xf32, #tpu.memory_space<vmem>>, %arg5: memref<16x128xf32, #tpu.memory_space<vmem>>) attributes {dimension_semantics = [#tpu.dimension_semantics<parallel>], iteration_bounds = array<i64: 4>, scalar_prefetch = 0 : i64, scratch_operands = 0 : i64, tpu.core_type = #tpu.core_type<tc>, window_params = [{transform_indices = @transform_0, window_bounds = array<i64: 16, 16>}, {pipeline_mode = #tpu.pipeline_mode<synchronous>, transform_indices = @transform_1, window_bounds = array<i64: 16, 128>}, {pipeline_mode = #tpu.pipeline_mode<synchronous>, transform_indices = @transform_2, window_bounds = array<i64: 1, 128>}, {pipeline_mode = #tpu.pipeline_mode<synchronous>, transform_indices = @transform_3, window_bounds = array<i64: 1, 128>}, {transform_indices = @transform_4, window_bounds = array<i64: 16, 128>}]} {
    %c0 = arith.constant 0 : index
    %c0_0 = arith.constant 0 : index
    %0 = vector.load %arg3[%c0, %c0_0] : memref<1x128xf32, #tpu.memory_space<vmem>>, vector<1x128xf32>
    %c0_1 = arith.constant 0 : index
    %c0_2 = arith.constant 0 : index
    %1 = vector.load %arg4[%c0_1, %c0_2] : memref<1x128xf32, #tpu.memory_space<vmem>>, vector<1x128xf32>
    %cst = arith.constant 0.000000e+00 : f32
    %2 = vector.broadcast %cst : f32 to vector<1x128xf32>
    %3 = arith.maximumf %1, %2 : vector<1x128xf32>
    %c0_3 = arith.constant 0 : index
    %c0_4 = arith.constant 0 : index
    %4 = vector.load %arg1[%c0_3, %c0_4] : memref<16x16xf32, #tpu.memory_space<vmem>>, vector<16x16xf32>
    %c0_5 = arith.constant 0 : index
    %c0_6 = arith.constant 0 : index
    %5 = vector.load %arg2[%c0_5, %c0_6] : memref<16x128xf32, #tpu.memory_space<vmem>>, vector<16x128xf32>
    %cst_7 = arith.constant dense<0.000000e+00> : vector<16x128xf32>
    %6 = tpu.matmul %4, %5, %cst_7 {dimension_numbers = #tpu.dot_dimension_numbers<[1], [0], [0], [1], [0, 0, 1, 1], [], []>} : vector<16x16xf32>, vector<16x128xf32>, vector<16x128xf32> -> vector<16x128xf32>
    %7 = vector.broadcast %0 : vector<1x128xf32> to vector<16x128xf32>
    %8 = arith.addf %6, %7 : vector<16x128xf32>
    %9 = vector.broadcast %3 : vector<1x128xf32> to vector<16x128xf32>
    %10 = arith.mulf %8, %9 : vector<16x128xf32>
    %c0_8 = arith.constant 0 : index
    %c0_9 = arith.constant 0 : index
    %11 = vector.load %arg5[%c0_8, %c0_9] : memref<16x128xf32, #tpu.memory_space<vmem>>, vector<16x128xf32>
    tpu.vector_store %arg5[%c0_8, %c0_9], %10 {strides = array<i32>} : memref<16x128xf32, #tpu.memory_space<vmem>>, vector<16x128xf32>,
    return
  }
  func.func @transform_0(%arg0: i32) -> (i32, i32) {
    %c0_i32 = arith.constant 0 : i32
    %c0_i32_0 = arith.constant 0 : i32
    return %arg0, %c0_i32 : i32, i32
  }
  func.func @transform_1(%arg0: i32) -> (i32, i32) {
    %c0_i32 = arith.constant 0 : i32
    %c0_i32_0 = arith.constant 0 : i32
    %c0_i32_1 = arith.constant 0 : i32
    return %c0_i32, %c0_i32_0 : i32, i32
  }
  func.func @transform_2(%arg0: i32) -> (i32, i32) {
    %c0_i32 = arith.constant 0 : i32
    %c0_i32_0 = arith.constant 0 : i32
    %c0_i32_1 = arith.constant 0 : i32
    return %c0_i32, %c0_i32_0 : i32, i32
  }
  func.func @transform_3(%arg0: i32) -> (i32, i32) {
    %c0_i32 = arith.constant 0 : i32
    %c0_i32_0 = arith.constant 0 : i32
    %c0_i32_1 = arith.constant 0 : i32
    return %c0_i32, %c0_i32_0 : i32, i32
  }
  func.func @transform_4(%arg0: i32) -> (i32, i32) {
    %c0_i32 = arith.constant 0 : i32
    %c0_i32_0 = arith.constant 0 : i32
    return %arg0, %c0_i32 : i32, i32
  }
}

</mosaic_0001>

<llo_original>
// kernel: tpu_custom_call.1
$region0: #{tpu_custom_call.1}
  #allocation0 [shape = 'u32[]', space=smem, size = 0x4, offset = 0x4, fixed_abs, tag = 'smem constant byte address 0x4 - core index']
  #allocation1 [shape = 'u32[144,128]{1,0:T(1,128)}', space=vmem, size = 0x12000, scoped, tag = 'internal scratch']
  %s0 = inlined_call_operand.vmem [shape: f32[64,16], index: 0, kind: input, shape index: {}]
  %s1 = inlined_call_operand.vmem [shape: f32[16,128], index: 1, kind: input, shape index: {}]
  %s2 = inlined_call_operand.vmem [shape: f32[1,128], index: 2, kind: input, shape index: {}]
  %s3 = inlined_call_operand.vmem [shape: f32[1,128], index: 3, kind: input, shape index: {}]
  %s4 = inlined_call_operand.hbm [shape: f32[64,128], index: 4, kind: output, shape index: {}]
  %s5 = sld [smem:[#allocation0]]
  $region49: #{tpu_custom_call.1} parent=0
    _
  %s7 = ssub.s32 1, %s5
  %s8 = scalar_select 0, %s7, %s5
  $region1: #{tpu_custom_call.1} parent=0
    #allocation2 [shape = 'u8[16384]{0}', space=vmem, size = 0x4000, scoped, tag = 'output window, operand 0']
    #allocation3 [shape = 's32[2]{0}', space=sflag, size = 0x8, scoped, tag = 'scoped memory for tpu_custom_call.1']
    %9 = vsyncpa [#allocation3], 0
    %s10 = scalar_lea.sflag [#allocation3], 1
    %11 = vsyncpa %s10, 0
    loop: start=0, step=1, limit=6
    $region2: #{tpu_custom_call.1} parent=1 // loop_pre_header
      _
    $region3: #{tpu_custom_call.1} parent=1 // loop_header
      %s13 = sphi 0, %s17
      %p14 = scmp.ge.s32.totalorder %s13, 6
      %s23 = sphi 0, %s25
      %s26 = sphi 0, %s23
      %s27 = sphi 0, %s26
      %s43 = sphi 0, %s27
      %s47 = sphi 0, %s47
      %s49 = sphi 0, %s47
      %s50 = sphi 0, %s49
      %s64 = sphi 0, %s50
      %s68 = sphi 0, %s68
      %s70 = sphi 0, %s68
      %s71 = sphi 0, %s70
      %s85 = sphi 0, %s71
      %s89 = sphi 0, %s89
      %s91 = sphi 0, %s89
      %s92 = sphi 0, %s91
      %s106 = sphi 0, %s92
      %s112 = sphi 0, %s114
      %s115 = sphi 0, %s112
      %s116 = sphi 0, %s115
      %s132 = sphi 0, %s116
    $region4: #{tpu_custom_call.1} parent=1 // loop_header_branch
      %16 = sbr.rel (%p14) target = $region8
    $region5: #{tpu_custom_call.1} parent=1 // loop_body
      %s18 = ssub.s32 %s13, 1
      %s19 = ssub.s32 %s13, 2
      %s20 = sadd.s32 %s13, 1
      %s21 = ssub.s32 %s13, %s20
      %p22 = scmp.eq.s32.totalorder %s21, 0
      %s24 = sadd.s32 %s23, 1
      %s25 = scalar_select %p22, %s23, %s24
      %p28 = pneg %p22
      %p29 = scmp.eq.s32.totalorder %s13, 3
      %p30 = por %p28, %p29
      %p31 = scmp.ne.s32.totalorder %s23, %s26
      %p32 = scmp.eq.s32.totalorder %s13, 0
      %p33 = por %p31, %p32
      %p34 = scmp.ne.s32.totalorder %s23, %s26
      %p35 = scmp.eq.s32.totalorder %s18, 3
      %p36 = por %p34, %p35
      %p37 = scmp.ne.s32.totalorder %s26, %s27
      %p38 = scmp.eq.s32.totalorder %s18, 0
      %p39 = por %p37, %p38
      %p40 = scmp.ne.s32.totalorder %s26, %s27
      %p41 = scmp.eq.s32.totalorder %s19, 3
      %p42 = por %p40, %p41
      %p44 = scmp.ne.s32.totalorder %s27, %s43
      %p45 = scmp.eq.s32.totalorder %s19, 0
      %p46 = por %p44, %p45
      %s48 = sadd.s32 %s47, 1
      %p51 = scmp.eq.s32.totalorder %s13, 3
      %p52 = scmp.ne.s32.totalorder %s47, %s49
      %p53 = scmp.eq.s32.totalorder %s13, 0
      %p54 = por %p52, %p53
      %p55 = scmp.ne.s32.totalorder %s47, %s49
      %p56 = scmp.eq.s32.totalorder %s18, 3
      %p57 = por %p55, %p56
      %p58 = scmp.ne.s32.totalorder %s49, %s50
      %p59 = scmp.eq.s32.totalorder %s18, 0
      %p60 = por %p58, %p59
      %p61 = scmp.ne.s32.totalorder %s49, %s50
      %p62 = scmp.eq.s32.totalorder %s19, 3
      %p63 = por %p61, %p62
      %p65 = scmp.ne.s32.totalorder %s50, %s64
      %p66 = scmp.eq.s32.totalorder %s19, 0
      %p67 = por %p65, %p66
      %s69 = sadd.s32 %s68, 1
      %p72 = scmp.eq.s32.totalorder %s13, 3
      %p73 = scmp.ne.s32.totalorder %s68, %s70
      %p74 = scmp.eq.s32.totalorder %s13, 0
      %p75 = por %p73, %p74
      %p76 = scmp.ne.s32.totalorder %s68, %s70
      %p77 = scmp.eq.s32.totalorder %s18, 3
      %p78 = por %p76, %p77
      %p79 = scmp.ne.s32.totalorder %s70, %s71
      %p80 = scmp.eq.s32.totalorder %s18, 0
      %p81 = por %p79, %p80
      %p82 = scmp.ne.s32.totalorder %s70, %s71
      %p83 = scmp.eq.s32.totalorder %s19, 3
      %p84 = por %p82, %p83
      %p86 = scmp.ne.s32.totalorder %s71, %s85
      %p87 = scmp.eq.s32.totalorder %s19, 0
      %p88 = por %p86, %p87
      %s90 = sadd.s32 %s89, 1
      %p93 = scmp.eq.s32.totalorder %s13, 3
      %p94 = scmp.ne.s32.totalorder %s89, %s91
      %p95 = scmp.eq.s32.totalorder %s13, 0
      %p96 = por %p94, %p95
      %p97 = scmp.ne.s32.totalorder %s89, %s91
      %p98 = scmp.eq.s32.totalorder %s18, 3
      %p99 = por %p97, %p98
      %p100 = scmp.ne.s32.totalorder %s91, %s92
      %p101 = scmp.eq.s32.totalorder %s18, 0
      %p102 = por %p100, %p101
      %p103 = scmp.ne.s32.totalorder %s91, %s92
      %p104 = scmp.eq.s32.totalorder %s19, 3
      %p105 = por %p103, %p104
      %p107 = scmp.ne.s32.totalorder %s92, %s106
      %p108 = scmp.eq.s32.totalorder %s19, 0
      %p109 = por %p107, %p108
      %s110 = ssub.s32 %s13, %s20
      %p111 = scmp.eq.s32.totalorder %s110, 0
      %s113 = sadd.s32 %s112, 1
      %s114 = scalar_select %p111, %s112, %s113
      %p117 = pneg %p111
      %p118 = scmp.eq.s32.totalorder %s13, 3
      %p119 = por %p117, %p118
      %p120 = scmp.ne.s32.totalorder %s112, %s115
      %p121 = scmp.eq.s32.totalorder %s13, 0
      %p122 = por %p120, %p121
      %p123 = scmp.ne.s32.totalorder %s112, %s115
      %p124 = scmp.eq.s32.totalorder %s18, 3
      %p125 = por %p123, %p124
      %p126 = scmp.ne.s32.totalorder %s115, %s116
      %p127 = scmp.eq.s32.totalorder %s18, 0
      %p128 = por %p126, %p127
      %p129 = scmp.ne.s32.totalorder %s115, %s116
      %p130 = scmp.eq.s32.totalorder %s19, 3
      %p131 = por %p129, %p130
      %p133 = scmp.ne.s32.totalorder %s116, %s132
      %p134 = scmp.eq.s32.totalorder %s19, 0
      %p135 = por %p133, %p134
      %p136 = scmp.le.s32.totalorder 1, %s13
      %p137 = scmp.lt.s32.totalorder %s13, 5
      %p138 = pnand %p136, %p137
      %p139 = pneg %p138
      // Predicated region
      $region9: #{tpu_custom_call.1} parent=5 // pred_check
        _
      $region10: #{tpu_custom_call.1} parent=5 // pred_check_branch
        %141 = sbr.rel (%p138) target = $region12
      $region11: #{tpu_custom_call.1} parent=5 // pred_region
        %s142 = ssub.s32 %s13, 1
        // Predicated region
        $region13: #{tpu_custom_call.1} parent=11 // pred_check
          %p143 = pneg %p60
        $region14: #{tpu_custom_call.1} parent=11 // pred_check_branch
          %145 = sbr.rel (%p143) target = $region16
        $region15: #{tpu_custom_call.1} parent=11 // pred_region
          _
        $region16: #{tpu_custom_call.1} parent=11 // pred_fallthru
          _
        // Predicated region
        $region17: #{tpu_custom_call.1} parent=11 // pred_check
          %p146 = pneg %p81
        $region18: #{tpu_custom_call.1} parent=11 // pred_check_branch
          %148 = sbr.rel (%p146) target = $region20
        $region19: #{tpu_custom_call.1} parent=11 // pred_region
          _
        $region20: #{tpu_custom_call.1} parent=11 // pred_fallthru
          _
        // Predicated region
        $region21: #{tpu_custom_call.1} parent=11 // pred_check
          %p149 = pneg %p102
        $region22: #{tpu_custom_call.1} parent=11 // pred_check_branch
          %151 = sbr.rel (%p149) target = $region24
        $region23: #{tpu_custom_call.1} parent=11 // pred_region
          _
        $region24: #{tpu_custom_call.1} parent=11 // pred_fallthru
          _
      $region12: #{tpu_custom_call.1} parent=5 // pred_fallthru
        _
      %p152 = scmp.lt.s32.totalorder %s13, 4
      // Predicated region
      $region25: #{tpu_custom_call.1} parent=5 // pred_check
        %p153 = pneg %p152
      $region26: #{tpu_custom_call.1} parent=5 // pred_check_branch
        %155 = sbr.rel (%p153) target = $region28
      $region27: #{tpu_custom_call.1} parent=5 // pred_region
        // Predicated region
        $region29: #{tpu_custom_call.1} parent=27 // pred_check
          %p156 = pneg %p33
        $region30: #{tpu_custom_call.1} parent=27 // pred_check_branch
          %158 = sbr.rel (%p156) target = $region32
        $region31: #{tpu_custom_call.1} parent=27 // pred_region
          %s159 = smul.u32 2, %s13
          %p160 = scmp.lt.s32.totalorder %s159, 7
          %s161 = scalar_select %p160, %s159, 7
          %s162 = smul.addr %s161, 8
          %s163 = scalar_lea.vmem %s0, %s162
          %s164 = smul.u32 2, %s13
        $region32: #{tpu_custom_call.1} parent=27 // pred_fallthru
          _
      $region28: #{tpu_custom_call.1} parent=5 // pred_fallthru
        _
      %p165 = scmp.le.s32.totalorder 1, %s13
      %p166 = scmp.lt.s32.totalorder %s13, 5
      %p167 = pnand %p165, %p166
      %p168 = pneg %p167
      // Predicated region
      $region33: #{tpu_custom_call.1} parent=5 // pred_check
        _
      $region34: #{tpu_custom_call.1} parent=5 // pred_check_branch
        %170 = sbr.rel (%p167) target = $region36
      $region35: #{tpu_custom_call.1} parent=5 // pred_region
        %s171 = ssub.s32 %s13, 1
        %s172 = smul.u32 2, %s18
        %p173 = scmp.lt.s32.totalorder %s172, 7
        %s174 = scalar_select %p173, %s172, 7
        %s175 = smul.addr %s174, 8
        %s176 = scalar_lea.vmem %s0, %s175
        %p177 = pneg %p39
        %p178 = pneg %p36
        %p179 = pneg %p60
        %p180 = pneg %p57
        %p181 = pneg %p81
        %p182 = pneg %p78
        %p183 = pneg %p102
        %p184 = pneg %p99
        %p185 = pneg %p128
        %p186 = pneg %p125
        %s187 = sand.u32 %s115, 1
        %s188 = scalar_lea.sflag [#allocation3], %s187
        %s189 = sand.u32 %s115, 1
        %s190 = smul.addr %s189, 16
        %s191 = scalar_lea.vmem [#allocation2], %s190
        %s192 = smul.u32 2, %s18
        %p193 = scmp.lt.s32.totalorder %s192, 7
        %s194 = scalar_select %p193, %s192, 7
        %s195 = smul.addr %s194, 8
        %s196 = scalar_lea.vmem %s0, %s195
        %s197 = smul.u32 2, %s18
        %s198 = smul.u32 2, %s18
        %v199 = vld [vmem:[%s2] sm:$0x1]
        %v200 = vld [vmem:[%s3] sm:$0x1]
        %v201 = vmax.f32 %v200, 0.0
        %v202 = vld [vmem:[%s196] sm:$0xff]
        %v203 = vld [vmem:[%s196 + $0x8] sm:$0xff]
        %v204 = vld [vmem:[%s1] sm:$0xff]
        %v205 = vld [vmem:[%s1 + $0x8] sm:$0xff]
        %v207 = vlaneseq
        %v208 = vshrl.u32 %v207, 7
        %v209 = vsub.s32 0, %v208
        %v210 = vrot.slane %v199, %v209
        %vm212 = vcmask 130048
        %v214 = vsel %vm212, %v202, 0
        %v217 = vsel %vm212, %v203, 0
        %219 = vmatprep.subr.mxu0 0.0
        %220 = vmatpush1.msra.mxu0 0.0
        %221 = vmatprep.subr.mxu0 0.0
        %222 = vmatpush1.msra.mxu0 0.0
        %223 = vmatprep.subr.mxu0 0.0
        %224 = vmatpush1.msra.mxu0 0.0
        %225 = vmatprep.subr.mxu0 0.0
        %226 = vmatpush1.msra.mxu0 0.0
        %227 = vmatprep.subr.mxu0 0.0
        %228 = vmatpush1.msra.mxu0 0.0
        %229 = vmatprep.subr.mxu0 0.0
        %230 = vmatpush1.msra.mxu0 0.0
        %231 = vmatprep.subr.mxu0 0.0
        %232 = vmatpush1.msra.mxu0 0.0
        %233 = vmatprep.subr.mxu0 0.0
        %234 = vmatpush1.msra.mxu0 0.0
        %235 = vmatprep.subr.mxu0 0.0
        %236 = vmatpush1.msra.mxu0 0.0
        %237 = vmatprep.subr.mxu0 0.0
        %238 = vmatpush1.msra.mxu0 0.0
        %239 = vmatprep.subr.mxu0 0.0
        %240 = vmatpush1.msra.mxu0 0.0
        %241 = vmatprep.subr.mxu0 0.0
        %242 = vmatpush1.msra.mxu0 0.0
        %243 = vmatprep.subr.mxu0 0.0
        %244 = vmatpush1.msra.mxu0 0.0
        %245 = vmatprep.subr.mxu0 0.0
        %246 = vmatpush1.msra.mxu0 0.0
        %247 = vmatprep.subr.mxu0 0.0
        %248 = vmatpush1.msra.mxu0 %v205
        %249 = vmatprep.subr.mxu0 0.0
        %250 = vmatpush1.msra.mxu0 %v204
        %251 = vmatprep.subr.mxu0 0.0
        %252 = vmatpush2.msra.mxu0 0.0
        %253 = vmatprep.subr.mxu0 0.0
        %254 = vmatpush2.msra.mxu0 0.0
        %255 = vmatprep.subr.mxu0 0.0
        %256 = vmatpush2.msra.mxu0 0.0
        %257 = vmatprep.subr.mxu0 0.0
        %258 = vmatpush2.msra.mxu0 0.0
        %259 = vmatprep.subr.mxu0 0.0
        %260 = vmatpush2.msra.mxu0 0.0
        %261 = vmatprep.subr.mxu0 0.0
        %262 = vmatpush2.msra.mxu0 0.0
        %263 = vmatprep.subr.mxu0 0.0
        %264 = vmatpush2.msra.mxu0 0.0
        %265 = vmatprep.subr.mxu0 0.0
        %266 = vmatpush2.msra.mxu0 0.0
        %267 = vmatprep.subr.mxu0 0.0
        %268 = vmatpush2.msra.mxu0 0.0
        %269 = vmatprep.subr.mxu0 0.0
        %270 = vmatpush2.msra.mxu0 0.0
        %271 = vmatprep.subr.mxu0 0.0
        %272 = vmatpush2.msra.mxu0 0.0
        %273 = vmatprep.subr.mxu0 0.0
        %274 = vmatpush2.msra.mxu0 0.0
        %275 = vmatprep.subr.mxu0 0.0
        %276 = vmatpush2.msra.mxu0 0.0
        %277 = vmatprep.subr.mxu0 0.0
        %278 = vmatpush2.msra.mxu0 0.0
        %279 = vmatprep.subr.mxu0 0.0
        %280 = vmatpush2.msra.mxu0 0.0
        %281 = vmatprep.subr.mxu0 0.0
        %282 = vmatpush2.msra.mxu0 0.0
        %283 = vmatprep.mubr.f32.mxu0 0.0
        %284 = vmatmul.mubr.f32.gmra.mxu0 %v214
        %v285 = vpop.f32.mrf.mxu0
        %v286 = vadd.f32 %v210, %v285
        %v287 = vpop.f32.mrf.mxu0
        %288 = vmatprep.mubr.f32.mxu0 0.0
        %289 = vmatmul.mubr.f32.gmra.mxu0 %v217
        %v290 = vpop.f32.mrf.mxu0
        %v291 = vadd.f32 %v210, %v290
        %v292 = vpop.f32.mrf.mxu0
        %293 = vdwg.mxu0
        %v295 = vlaneseq
        %v296 = vshrl.u32 %v295, 7
        %v297 = vsub.s32 0, %v296
        %v298 = vrot.slane %v201, %v297
        %v300 = vmul.f32 %v286, %v298
        %v301 = vmul.f32 %v291, %v298
        %302 = vst [vmem:[%s191] sm:$0xff] %v300
        %303 = vst [vmem:[%s191 + $0x8] sm:$0xff] %v301
        %s304 = sand.u32 %s115, 1
        %s305 = scalar_lea.sflag [#allocation3], %s304
        %s306 = sand.u32 %s115, 1
        %s307 = smul.addr %s306, 16
        %s308 = scalar_lea.vmem [#allocation2], %s307
        // Predicated region
        $region37: #{tpu_custom_call.1} parent=35 // pred_check
          %p309 = pneg %p125
        $region38: #{tpu_custom_call.1} parent=35 // pred_check_branch
          %311 = sbr.rel (%p309) target = $region40
        $region39: #{tpu_custom_call.1} parent=35 // pred_region
          %s312 = smul.u32 2, %s18
          %s314 = ssub.s32 256, 256
          %315 = vsyncadd %s305, %s314
          %s316 = smul.addr %s312, 128
          %s317 = scalar_lea.hbm %s4, %s316
          %s318 = sshll.u32 %s308, 4
          %s319 = int_to_ptr.vmem [resolvable:$true] %s318
          %324 = dma.vmem_to_hbm [thread:$0]  %s319, 256, %s317, %s305, 128, 128, 8
        $region40: #{tpu_custom_call.1} parent=35 // pred_fallthru
          _
      $region36: #{tpu_custom_call.1} parent=5 // pred_fallthru
        _
      %p325 = scmp.le.s32.totalorder 2, %s13
      // Predicated region
      $region41: #{tpu_custom_call.1} parent=5 // pred_check
        %p326 = pneg %p325
      $region42: #{tpu_custom_call.1} parent=5 // pred_check_branch
        %328 = sbr.rel (%p326) target = $region44
      $region43: #{tpu_custom_call.1} parent=5 // pred_region
        %s329 = ssub.s32 %s13, 2
        // Predicated region
        $region45: #{tpu_custom_call.1} parent=43 // pred_check
          %p330 = pneg %p131
        $region46: #{tpu_custom_call.1} parent=43 // pred_check_branch
          %332 = sbr.rel (%p330) target = $region48
        $region47: #{tpu_custom_call.1} parent=43 // pred_region
          %s333 = sand.u32 %s116, 1
          %s334 = scalar_lea.sflag [#allocation3], %s333
          %s335 = sand.u32 %s116, 1
          %s336 = smul.addr %s335, 16
          %s337 = scalar_lea.vmem [#allocation2], %s336
          %338 = dma.done %s334, 256
        $region48: #{tpu_custom_call.1} parent=43 // pred_fallthru
          _
      $region44: #{tpu_custom_call.1} parent=5 // pred_fallthru
        _
    $region6: #{tpu_custom_call.1} parent=1 // loop_footer
      %s17 = sadd.s32 1, %s13
    $region7: #{tpu_custom_call.1} parent=1 // loop_footer_branch
      %12 = sbr.rel target = $region3
    $region8: #{tpu_custom_call.1} parent=1 // loop_exit
      _
    %339 = vsyncpa [#allocation3], 1
    %s340 = scalar_lea.sflag [#allocation3], 1
    %341 = vsyncpa %s340, 1

</llo_original>
